<compile_context>
chip_gen: v5e
topology: v5e:2x2
jax: 0.10.0
libtpu: 0.0.40
codegen_flags: <defaults>
</compile_context>

<pallas_src>
import functools

import jax
import jax.numpy as jnp
from jax import lax
from jax.experimental import pallas as pl
from jax.experimental.pallas import tpu as pltpu


def _rank_select_kernel(K, j_chunk, s_ref, m_ref, o_ref):
    """One grid step = one batch tile, all heads.

    s_ref: (Bt, H, N) f32  per-head scores, node axis N on lanes (lane-dense)
    m_ref: (Bt, 1, N) i32  src_mask tile
    o_ref: (Bt, 1, N) i32  output mask tile (OR over heads of selections + mask)
    """
    Bt, H, N = s_ref.shape

    s_full = s_ref[...]                                  # (Bt, H, N), N on lanes
    # Single relayout per step: compared-against node k moves to sublanes.
    s_k = s_full[:, :, :, None]                          # (Bt, H, N, 1)
    # Tie-break triangle mask component, built once (shared over Bt and H).
    k_idx = lax.broadcasted_iota(jnp.int32, (1, 1, N, 1), 2)

    def select(j0, cj):
        # Ranked node j stays on lanes; slice along lanes is cheap.
        s_j = s_ref[:, :, pl.ds(j0, cj)][:, :, None, :]  # (Bt, H, 1, cj)
        j_idx = lax.broadcasted_iota(jnp.int32, (1, 1, 1, cj), 3) + j0
        tie = k_idx < j_idx                              # (1, 1, N, cj)
        # node j selected iff  #{k : s[k] < s[j]  or (s[k]==s[j] and k<j)} < K
        before = (s_k < s_j) | ((s_k == s_j) & tie)      # (Bt, H, N, cj)
        rank = jnp.sum(before.astype(jnp.int32), axis=2)  # (Bt, H, cj) sublane-reduce
        sel = (rank < K).astype(jnp.int32)                # (Bt, H, cj)
        sel_any = jnp.max(sel, axis=1, keepdims=True)     # (Bt, 1, cj) OR over heads
        return jnp.maximum(m_ref[:, :, pl.ds(j0, cj)], sel_any)

    n_chunks = N // j_chunk
    if n_chunks == 1:
        o_ref[...] = select(0, N)
    else:
        # Bound O(N^2) temporaries to (N, j_chunk) per head (v7x 64 MiB VMEM).
        @pl.loop(0, n_chunks)
        def _(c):
            j0 = pl.multiple_of(c * j_chunk, j_chunk)
            o_ref[:, :, pl.ds(j0, j_chunk)] = select(j0, j_chunk)


def _pick_bt(B):
    """Batch-tile: big enough to amortize per-step overhead, but keep >=2
    grid iterations (v7x has 2 TensorCores sharding the parallel axis)."""
    target = max(1, min(32, B // 2))
    for bt in range(target, 0, -1):
        if B % bt == 0:
            return bt
    return 1


def dynamic_pool_multi(x_list, src_mask, weight, bias, *, ratio=0.5):
    """x_list: list of (B, N, Hd) f32; src_mask: (B, 1, N) bool.
    weight: (1, Hd) (torch Linear weight), bias: (1,).
    Returns (x_list, src_mask_out) with src_mask_out bool (B, 1, N)."""
    heads = len(x_list)
    x = jnp.stack(x_list, axis=0)                         # (H, B, N, Hd)
    H, B, N, Hd = x.shape
    K = int((1.0 - ratio) * N)

    # score_layer = nn.Linear(Hd, 1). For small Hd (< 128 lanes) this matvec
    # is trivially mem-bound: let XLA do it and ship only lane-dense scores
    # (B, heads, N) into the kernel (perf-review small-Hd path).
    # TODO(synk): for Hd >= 128 fold the matvec into the kernel as an MXU
    # jnp.dot over the (heads*Bt*N, Hd) row block instead.
    w = weight.reshape(Hd).astype(jnp.float32)
    scores = jnp.einsum("hbnd,d->bhn", x.astype(jnp.float32), w) + bias.reshape(())

    mask_i32 = src_mask.astype(jnp.int32)                 # (B, 1, N)

    Bt = _pick_bt(B)
    j_chunk = N if (N <= 512 or N % 512 != 0) else 512

    kernel = functools.partial(_rank_select_kernel, K, j_chunk)
    cost = pl.CostEstimate(
        flops=2 * heads * B * N * N,
        transcendentals=0,
        bytes_accessed=(heads * B * N + 2 * B * N) * 4,
    )

    out = pl.pallas_call(
        kernel,
        out_shape=jax.ShapeDtypeStruct((B, 1, N), jnp.int32),
        grid_spec=pltpu.PrefetchScalarGridSpec(
            num_scalar_prefetch=0,
            grid=(B // Bt,),
            in_specs=[
                # scores: last two block dims (heads, N) == full array dims,
                # so any Bt is legal and N stays on lanes.
                pl.BlockSpec((Bt, heads, N), lambda i: (i, 0, 0)),
                pl.BlockSpec((Bt, 1, N), lambda i: (i, 0, 0)),
            ],
            out_specs=pl.BlockSpec((Bt, 1, N), lambda i: (i, 0, 0)),
        ),
        compiler_params=pltpu.CompilerParams(
            dimension_semantics=("parallel",)),
        cost_estimate=cost,
    )(scores, mask_i32)

    return x_list, out.astype(jnp.bool_)


def _reference(x_list, src_mask, weight, bias, ratio=0.5):
    """Pure-JAX reference mirroring the PyTorch forward (bool src_mask)."""
    drop_ratio = 1.0 - ratio
    B, _, N = src_mask.shape
    K = int(drop_ratio * N)
    out = jnp.zeros_like(src_mask)
    for x in x_list:
        score = jnp.einsum("bnh,h->bn", x, weight.reshape(-1)) + bias[0]
        _, idx = jax.lax.top_k(-score, K)                 # K smallest
        sel = jnp.zeros((B, N), dtype=bool)
        sel = sel.at[jnp.arange(B)[:, None], idx].set(True)
        out = out | src_mask | sel[:, None, :]
    return out


if __name__ == "__main__":
    key = jax.random.PRNGKey(0)
    B, N, Hd, heads = 2, 16, 32, 3
    ks = jax.random.split(key, heads + 3)

    x_list = [jax.random.normal(ks[i], (B, N, Hd), dtype=jnp.float32)
              for i in range(heads)]
    src_mask = jax.random.bernoulli(ks[heads], 0.3, (B, 1, N))        # bool
    # nn.Linear(graph_hidden_size, 1): weight (1, Hd), bias (1,)
    weight = 0.1 * jax.random.normal(ks[heads + 1], (1, Hd), jnp.float32)
    bias = 0.1 * jax.random.normal(ks[heads + 2], (1,), jnp.float32)

    x_out, mask_out = dynamic_pool_multi(x_list, src_mask, weight, bias)
    jax.block_until_ready(mask_out)

    ref = _reference(x_list, src_mask, weight, bias)
    assert mask_out.shape == src_mask.shape
    assert mask_out.dtype == jnp.bool_
    assert bool(jnp.all(mask_out == ref)), "kernel mask mismatch vs reference"
    assert all(xo is xi for xo, xi in zip(x_out, x_list))             # passthrough

    print("KERNEL_OK")
</pallas_src>

<mosaic_0001>
module attributes {stable_mosaic.version = 11 : i64} {
  func.func @_rank_select_kernel(%arg0: i32, %arg1: memref<1x3x16xf32, #tpu.memory_space<vmem>>, %arg2: memref<1x1x16xi32, #tpu.memory_space<vmem>>, %arg3: memref<1x1x16xi32, #tpu.memory_space<vmem>>) attributes {dimension_semantics = [#tpu.dimension_semantics<parallel>], iteration_bounds = array<i64: 2>, scalar_prefetch = 0 : i64, scratch_operands = 0 : i64, tpu.core_type = #tpu.core_type<tc>, window_params = [{transform_indices = @transform_0, window_bounds = array<i64: 1, 3, 16>}, {transform_indices = @transform_1, window_bounds = array<i64: 1, 1, 16>}, {transform_indices = @transform_2, window_bounds = array<i64: 1, 1, 16>}]} {
    %c0 = arith.constant 0 : index
    %c0_0 = arith.constant 0 : index
    %c0_1 = arith.constant 0 : index
    %0 = vector.load %arg1[%c0, %c0_0, %c0_1] : memref<1x3x16xf32, #tpu.memory_space<vmem>>, vector<1x3x16xf32>
    %1 = vector.shape_cast %0 : vector<1x3x16xf32> to vector<1x3x16x1xf32>
    %2 = tpu.iota {dimensions = array<i32: 2>} : vector<1x1x16x1xi32>
    %c0_2 = arith.constant 0 : index
    %c0_3 = arith.constant 0 : index
    %c0_4 = arith.constant 0 : index
    %3 = vector.load %arg1[%c0_2, %c0_3, %c0_4] : memref<1x3x16xf32, #tpu.memory_space<vmem>>, vector<1x3x16xf32>
    %4 = vector.shape_cast %3 : vector<1x3x16xf32> to vector<1x3x1x16xf32>
    %5 = tpu.iota {dimensions = array<i32: 3>} : vector<1x1x1x16xi32>
    %c0_i32 = arith.constant 0 : i32
    %6 = vector.broadcast %c0_i32 : i32 to vector<1x1x1x16xi32>
    %7 = arith.addi %5, %6 : vector<1x1x1x16xi32>
    %8 = vector.broadcast %2 : vector<1x1x16x1xi32> to vector<1x1x16x16xi32>
    %9 = vector.broadcast %7 : vector<1x1x1x16xi32> to vector<1x1x16x16xi32>
    %10 = arith.cmpi slt, %8, %9 : vector<1x1x16x16xi32>
    %11 = vector.broadcast %1 : vector<1x3x16x1xf32> to vector<1x3x16x16xf32>
    %12 = vector.broadcast %4 : vector<1x3x1x16xf32> to vector<1x3x16x16xf32>
    %13 = arith.cmpf olt, %11, %12 : vector<1x3x16x16xf32>
    %14 = vector.broadcast %1 : vector<1x3x16x1xf32> to vector<1x3x16x16xf32>
    %15 = vector.broadcast %4 : vector<1x3x1x16xf32> to vector<1x3x16x16xf32>
    %16 = arith.cmpf oeq, %14, %15 : vector<1x3x16x16xf32>
    %17 = vector.broadcast %10 : vector<1x1x16x16xi1> to vector<1x3x16x16xi1>
    %18 = arith.andi %16, %17 : vector<1x3x16x16xi1>
    %19 = arith.ori %13, %18 : vector<1x3x16x16xi1>
    %20 = arith.extui %19 : vector<1x3x16x16xi1> to vector<1x3x16x16xi32>
    %cst = arith.constant dense<0> : vector<1x3x16xi32>
    %21 = vector.multi_reduction <add>, %20, %cst [2] : vector<1x3x16x16xi32> to vector<1x3x16xi32>
    %c8_i32 = arith.constant 8 : i32
    %22 = vector.broadcast %c8_i32 : i32 to vector<1x3x16xi32>
    %23 = arith.cmpi slt, %21, %22 : vector<1x3x16xi32>
    %24 = arith.extui %23 : vector<1x3x16xi1> to vector<1x3x16xi32>
    %cst_5 = arith.constant dense<-2147483648> : vector<1x16xi32>
    %25 = vector.multi_reduction <maxsi>, %24, %cst_5 [1] : vector<1x3x16xi32> to vector<1x16xi32>
    %26 = vector.shape_cast %25 : vector<1x16xi32> to vector<1x1x16xi32>
    %c0_6 = arith.constant 0 : index
    %c0_7 = arith.constant 0 : index
    %c0_8 = arith.constant 0 : index
    %27 = vector.load %arg2[%c0_6, %c0_7, %c0_8] : memref<1x1x16xi32, #tpu.memory_space<vmem>>, vector<1x1x16xi32>
    %28 = arith.maxsi %27, %26 : vector<1x1x16xi32>
    %c0_9 = arith.constant 0 : index
    %c0_10 = arith.constant 0 : index
    %c0_11 = arith.constant 0 : index
    %29 = vector.load %arg3[%c0_9, %c0_10, %c0_11] : memref<1x1x16xi32, #tpu.memory_space<vmem>>, vector<1x1x16xi32>
    tpu.vector_store %arg3[%c0_9, %c0_10, %c0_11], %28 {strides = array<i32>} : memref<1x1x16xi32, #tpu.memory_space<vmem>>, vector<1x1x16xi32>,
    return
  }
  func.func @transform_0(%arg0: i32) -> (i32, i32, i32) {
    %c0_i32 = arith.constant 0 : i32
    %c0_i32_0 = arith.constant 0 : i32
    %c0_i32_1 = arith.constant 0 : i32
    return %arg0, %c0_i32, %c0_i32_0 : i32, i32, i32
  }
  func.func @transform_1(%arg0: i32) -> (i32, i32, i32) {
    %c0_i32 = arith.constant 0 : i32
    %c0_i32_0 = arith.constant 0 : i32
    %c0_i32_1 = arith.constant 0 : i32
    return %arg0, %c0_i32, %c0_i32_0 : i32, i32, i32
  }
  func.func @transform_2(%arg0: i32) -> (i32, i32, i32) {
    %c0_i32 = arith.constant 0 : i32
    %c0_i32_0 = arith.constant 0 : i32
    %c0_i32_1 = arith.constant 0 : i32
    return %arg0, %c0_i32, %c0_i32_0 : i32, i32, i32
  }
}

</mosaic_0001>

<llo_original>
// kernel: tpu_custom_call.1
$region0: #{tpu_custom_call.1}
  #allocation0 [shape = 'u32[]', space=smem, size = 0x4, offset = 0x4, fixed_abs, tag = 'smem constant byte address 0x4 - core index']
  #allocation1 [shape = 'u32[72,128]{1,0:T(1,128)}', space=vmem, size = 0x9000, scoped, tag = 'internal scratch']
  %s0 = inlined_call_operand.vmem [shape: f32[2,3,16], index: 0, kind: input, shape index: {}]
  %s1 = inlined_call_operand.vmem [shape: s32[2,1,16], index: 1, kind: input, shape index: {}]
  %s2 = inlined_call_operand.hbm [shape: s32[2,1,16], index: 2, kind: output, shape index: {}]
  %s3 = sld [smem:[#allocation0]]
  $region41: #{tpu_custom_call.1} parent=0
    _
  %s5 = ssub.s32 1, %s3
  %s6 = scalar_select 0, %s5, %s3
  $region1: #{tpu_custom_call.1} parent=0
    #allocation2 [shape = 'u8[1024]{0}', space=vmem, size = 0x400, scoped, tag = 'output window, operand 0']
    #allocation3 [shape = 's32[2]{0}', space=sflag, size = 0x8, scoped, tag = 'scoped memory for tpu_custom_call.1']
    %7 = vsyncpa [#allocation3], 0
    %s8 = scalar_lea.sflag [#allocation3], 1
    %9 = vsyncpa %s8, 0
    loop: start=0, step=1, limit=4
    $region2: #{tpu_custom_call.1} parent=1 // loop_pre_header
      _
    $region3: #{tpu_custom_call.1} parent=1 // loop_header
      %s11 = sphi 0, %s15
      %p12 = scmp.ge.s32.totalorder %s11, 4
      %s21 = sphi 0, %s23
      %s24 = sphi 0, %s21
      %s25 = sphi 0, %s24
      %s41 = sphi 0, %s25
      %s47 = sphi 0, %s49
      %s50 = sphi 0, %s47
      %s51 = sphi 0, %s50
      %s67 = sphi 0, %s51
      %s73 = sphi 0, %s75
      %s76 = sphi 0, %s73
      %s77 = sphi 0, %s76
      %s93 = sphi 0, %s77
    $region4: #{tpu_custom_call.1} parent=1 // loop_header_branch
      %14 = sbr.rel (%p12) target = $region8
    $region5: #{tpu_custom_call.1} parent=1 // loop_body
      %s16 = ssub.s32 %s11, 1
      %s17 = ssub.s32 %s11, 2
      %s18 = sadd.s32 %s11, 1
      %s19 = ssub.s32 %s11, %s18
      %p20 = scmp.eq.s32.totalorder %s19, 0
      %s22 = sadd.s32 %s21, 1
      %s23 = scalar_select %p20, %s21, %s22
      %p26 = pneg %p20
      %p27 = scmp.eq.s32.totalorder %s11, 1
      %p28 = por %p26, %p27
      %p29 = scmp.ne.s32.totalorder %s21, %s24
      %p30 = scmp.eq.s32.totalorder %s11, 0
      %p31 = por %p29, %p30
      %p32 = scmp.ne.s32.totalorder %s21, %s24
      %p33 = scmp.eq.s32.totalorder %s16, 1
      %p34 = por %p32, %p33
      %p35 = scmp.ne.s32.totalorder %s24, %s25
      %p36 = scmp.eq.s32.totalorder %s16, 0
      %p37 = por %p35, %p36
      %p38 = scmp.ne.s32.totalorder %s24, %s25
      %p39 = scmp.eq.s32.totalorder %s17, 1
      %p40 = por %p38, %p39
      %p42 = scmp.ne.s32.totalorder %s25, %s41
      %p43 = scmp.eq.s32.totalorder %s17, 0
      %p44 = por %p42, %p43
      %s45 = ssub.s32 %s11, %s18
      %p46 = scmp.eq.s32.totalorder %s45, 0
      %s48 = sadd.s32 %s47, 1
      %s49 = scalar_select %p46, %s47, %s48
      %p52 = pneg %p46
      %p53 = scmp.eq.s32.totalorder %s11, 1
      %p54 = por %p52, %p53
      %p55 = scmp.ne.s32.totalorder %s47, %s50
      %p56 = scmp.eq.s32.totalorder %s11, 0
      %p57 = por %p55, %p56
      %p58 = scmp.ne.s32.totalorder %s47, %s50
      %p59 = scmp.eq.s32.totalorder %s16, 1
      %p60 = por %p58, %p59
      %p61 = scmp.ne.s32.totalorder %s50, %s51
      %p62 = scmp.eq.s32.totalorder %s16, 0
      %p63 = por %p61, %p62
      %p64 = scmp.ne.s32.totalorder %s50, %s51
      %p65 = scmp.eq.s32.totalorder %s17, 1
      %p66 = por %p64, %p65
      %p68 = scmp.ne.s32.totalorder %s51, %s67
      %p69 = scmp.eq.s32.totalorder %s17, 0
      %p70 = por %p68, %p69
      %s71 = ssub.s32 %s11, %s18
      %p72 = scmp.eq.s32.totalorder %s71, 0
      %s74 = sadd.s32 %s73, 1
      %s75 = scalar_select %p72, %s73, %s74
      %p78 = pneg %p72
      %p79 = scmp.eq.s32.totalorder %s11, 1
      %p80 = por %p78, %p79
      %p81 = scmp.ne.s32.totalorder %s73, %s76
      %p82 = scmp.eq.s32.totalorder %s11, 0
      %p83 = por %p81, %p82
      %p84 = scmp.ne.s32.totalorder %s73, %s76
      %p85 = scmp.eq.s32.totalorder %s16, 1
      %p86 = por %p84, %p85
      %p87 = scmp.ne.s32.totalorder %s76, %s77
      %p88 = scmp.eq.s32.totalorder %s16, 0
      %p89 = por %p87, %p88
      %p90 = scmp.ne.s32.totalorder %s76, %s77
      %p91 = scmp.eq.s32.totalorder %s17, 1
      %p92 = por %p90, %p91
      %p94 = scmp.ne.s32.totalorder %s77, %s93
      %p95 = scmp.eq.s32.totalorder %s17, 0
      %p96 = por %p94, %p95
      %p97 = scmp.le.s32.totalorder 1, %s11
      %p98 = scmp.lt.s32.totalorder %s11, 3
      %p99 = pnand %p97, %p98
      %p100 = pneg %p99
      // Predicated region
      $region9: #{tpu_custom_call.1} parent=5 // pred_check
        _
      $region10: #{tpu_custom_call.1} parent=5 // pred_check_branch
        %102 = sbr.rel (%p99) target = $region12
      $region11: #{tpu_custom_call.1} parent=5 // pred_region
        %s103 = ssub.s32 %s11, 1
      $region12: #{tpu_custom_call.1} parent=5 // pred_fallthru
        _
      %p104 = scmp.lt.s32.totalorder %s11, 2
      // Predicated region
      $region13: #{tpu_custom_call.1} parent=5 // pred_check
        %p105 = pneg %p104
      $region14: #{tpu_custom_call.1} parent=5 // pred_check_branch
        %107 = sbr.rel (%p105) target = $region16
      $region15: #{tpu_custom_call.1} parent=5 // pred_region
        // Predicated region
        $region17: #{tpu_custom_call.1} parent=15 // pred_check
          %p108 = pneg %p31
        $region18: #{tpu_custom_call.1} parent=15 // pred_check_branch
          %110 = sbr.rel (%p108) target = $region20
        $region19: #{tpu_custom_call.1} parent=15 // pred_region
          %p111 = scmp.lt.s32.totalorder %s11, 1
          %s112 = scalar_select %p111, %s11, 1
          %s113 = smul.addr %s112, 4
          %s114 = scalar_lea.vmem %s0, %s113
        $region20: #{tpu_custom_call.1} parent=15 // pred_fallthru
          _
        // Predicated region
        $region21: #{tpu_custom_call.1} parent=15 // pred_check
          %p115 = pneg %p57
        $region22: #{tpu_custom_call.1} parent=15 // pred_check_branch
          %117 = sbr.rel (%p115) target = $region24
        $region23: #{tpu_custom_call.1} parent=15 // pred_region
          %p118 = scmp.lt.s32.totalorder %s11, 1
          %s119 = scalar_select %p118, %s11, 1
          %s120 = scalar_lea.vmem %s1, %s119
        $region24: #{tpu_custom_call.1} parent=15 // pred_fallthru
          _
      $region16: #{tpu_custom_call.1} parent=5 // pred_fallthru
        _
      %p121 = scmp.le.s32.totalorder 1, %s11
      %p122 = scmp.lt.s32.totalorder %s11, 3
      %p123 = pnand %p121, %p122
      %p124 = pneg %p123
      // Predicated region
      $region25: #{tpu_custom_call.1} parent=5 // pred_check
        _
      $region26: #{tpu_custom_call.1} parent=5 // pred_check_branch
        %126 = sbr.rel (%p123) target = $region28
      $region27: #{tpu_custom_call.1} parent=5 // pred_region
        %s127 = ssub.s32 %s11, 1
        %p128 = scmp.lt.s32.totalorder %s16, 1
        %s129 = scalar_select %p128, %s16, 1
        %s130 = smul.addr %s129, 4
        %s131 = scalar_lea.vmem %s0, %s130
        %p132 = pneg %p37
        %p133 = pneg %p34
        %p134 = scmp.lt.s32.totalorder %s16, 1
        %s135 = scalar_select %p134, %s16, 1
        %s136 = scalar_lea.vmem %s1, %s135
        %p137 = pneg %p63
        %p138 = pneg %p60
        %p139 = pneg %p89
        %p140 = pneg %p86
        %s141 = sand.u32 %s76, 1
        %s142 = scalar_lea.sflag [#allocation3], %s141
        %s143 = sand.u32 %s76, 1
        %s144 = scalar_lea.vmem [#allocation2], %s143
        %p145 = scmp.lt.s32.totalorder %s16, 1
        %s146 = scalar_select %p145, %s16, 1
        %s147 = smul.addr %s146, 4
        %s148 = scalar_lea.vmem %s0, %s147
        %p149 = scmp.lt.s32.totalorder %s16, 1
        %s150 = scalar_select %p149, %s16, 1
        %s151 = scalar_lea.vmem %s1, %s150
        %v152 = vld [vmem:[%s148] sm:$0x7]
        %v153 = vperm.slane %v152, 0
        %v154 = vlaneseq
        %v155 = vshrl.u32 %v154, 7
        %157 = vset.pattern.permute.xlu0 %v155
        %158 = vperm.xlu0 %157, %v153
        %v159 = vpop.permute.xlu0 %158
        %v160 = vlaneseq
        %v161 = vshrl.u32 %v160, 7
        %v162 = vadd.s32 %v161, 8
        %163 = vset.pattern.permute.xlu0 %v162
        %164 = vperm.xlu0 %163, %v153
        %v165 = vpop.permute.xlu0 %164
        %v166 = vperm.slane %v152, 1
        %v167 = vlaneseq
        %v168 = vshrl.u32 %v167, 7
        %170 = vset.pattern.permute.xlu0 %v168
        %171 = vperm.xlu0 %170, %v166
        %v172 = vpop.permute.xlu0 %171
        %v173 = vlaneseq
        %v174 = vshrl.u32 %v173, 7
        %v175 = vadd.s32 %v174, 8
        %176 = vset.pattern.permute.xlu0 %v175
        %177 = vperm.xlu0 %176, %v166
        %v178 = vpop.permute.xlu0 %177
        %v179 = vperm.slane %v152, 2
        %v180 = vlaneseq
        %v181 = vshrl.u32 %v180, 7
        %183 = vset.pattern.permute.xlu0 %v181
        %184 = vperm.xlu0 %183, %v179
        %v185 = vpop.permute.xlu0 %184
        %v186 = vlaneseq
        %v187 = vshrl.u32 %v186, 7
        %v188 = vadd.s32 %v187, 8
        %189 = vset.pattern.permute.xlu0 %v188
        %190 = vperm.xlu0 %189, %v179
        %v191 = vpop.permute.xlu0 %190
        %v192 = vlaneseq
        %v193 = vshrl.u32 %v192, 7
        %v194 = vadd.s32 %v193, 8
        %v196 = vrot.slane %v152, 1
        %v197 = vrot.slane %v152, 2
        %v198 = vlaneseq
        %v199 = vand.u32 %v198, 127
        %vm200 = vcmp.lt.s32.totalorder %v193, %v199
        %vm201 = vcmp.lt.s32.totalorder %v194, %v199
        %v202 = vperm.slane %v152, 0
        %v203 = vperm.slane %v196, 0
        %v204 = vperm.slane %v197, 0
        %vm208 = vcmp.lt.f32.partialorder %v159, %v202
        %vm209 = vcmp.lt.f32.partialorder %v165, %v202
        %vm210 = vcmp.lt.f32.partialorder %v172, %v203
        %vm211 = vcmp.lt.f32.partialorder %v178, %v203
        %vm212 = vcmp.lt.f32.partialorder %v185, %v204
        %vm213 = vcmp.lt.f32.partialorder %v191, %v204
        %vm214 = vcmp.eq.f32.partialorder %v159, %v202
        %vm215 = vcmp.eq.f32.partialorder %v165, %v202
        %vm216 = vcmp.eq.f32.partialorder %v172, %v203
        %vm217 = vcmp.eq.f32.partialorder %v178, %v203
        %vm218 = vcmp.eq.f32.partialorder %v185, %v204
        %vm219 = vcmp.eq.f32.partialorder %v191, %v204
        %v220 = vsel %vm200, 1, 0
        %v221 = vsel %vm201, 1, 0
        %vm222 = vcmp.eq.s32.totalorder %v220, 1
        %vm223 = vcmp.eq.s32.totalorder %v221, 1
        %vm224 = vmand %vm214, %vm222
        %vm225 = vmand %vm215, %vm223
        %vm226 = vmand %vm216, %vm222
        %vm227 = vmand %vm217, %vm223
        %vm228 = vmand %vm218, %vm222
        %vm229 = vmand %vm219, %vm223
        %vm230 = vmor %vm208, %vm224
        %vm231 = vmor %vm209, %vm225
        %vm232 = vmor %vm210, %vm226
        %vm233 = vmor %vm211, %vm227
        %vm234 = vmor %vm212, %vm228
        %vm235 = vmor %vm213, %vm229
        %v236 = vsel %vm230, 1, 0
        %v237 = vsel %vm231, 1, 0
        %v238 = vsel %vm232, 1, 0
        %v239 = vsel %vm233, 1, 0
        %v240 = vsel %vm234, 1, 0
        %v241 = vsel %vm235, 1, 0
        %vm242 = vcmask 130048
        %v243 = vsel %vm242, %v236, 0
        %v244 = vsel %vm242, %v237, 0
        %v245 = vadd.s32 %v243, %v244
        %v246 = vrot.slane %v245, 4
        %v247 = vadd.s32 %v245, %v246
        %v248 = vrot.slane %v247, 2
        %v249 = vadd.s32 %v247, %v248
        %v250 = vrot.slane %v249, 1
        %v251 = vadd.s32 %v249, %v250
        %v252 = vsel %vm242, %v238, 0
        %v253 = vsel %vm242, %v239, 0
        %v254 = vadd.s32 %v252, %v253
        %v255 = vrot.slane %v254, 4
        %v256 = vadd.s32 %v254, %v255
        %v257 = vrot.slane %v256, 2
        %v258 = vadd.s32 %v256, %v257
        %v259 = vrot.slane %v258, 1
        %v260 = vadd.s32 %v258, %v259
        %v261 = vsel %vm242, %v240, 0
        %v262 = vsel %vm242, %v241, 0
        %v263 = vadd.s32 %v261, %v262
        %v264 = vrot.slane %v263, 4
        %v265 = vadd.s32 %v263, %v264
        %v266 = vrot.slane %v265, 2
        %v267 = vadd.s32 %v265, %v266
        %v268 = vrot.slane %v267, 1
        %v269 = vadd.s32 %v267, %v268
        %vm270 = vcmp.lt.s32.totalorder %v251, 8
        %vm271 = vcmp.lt.s32.totalorder %v260, 8
        %vm272 = vcmp.lt.s32.totalorder %v269, 8
        %v273 = vsel %vm270, 1, 0
        %v274 = vsel %vm271, 1, 0
        %v275 = vsel %vm272, 1, 0
        %v276 = vsel %vm242, %v273, 2147483648
        %v277 = vsel %vm242, %v274, 2147483648
        %v278 = vsel %vm242, %v275, 2147483648
        %vm279 = vcmp.gt.s32.totalorder %v276, %v277
        %v280 = vsel %vm279, %v276, %v277
        %vm281 = vcmp.gt.s32.totalorder %v280, %v278
        %v282 = vsel %vm281, %v280, %v278
        %v283 = vld [vmem:[%s151] sm:$0x1]
        %vm284 = vcmp.gt.s32.totalorder %v283, %v282
        %v285 = vsel %vm284, %v283, %v282
        %vm286 = vcmask 122880
        %287 = vst.msk [vmem:[%s144] sm:$0x1] %vm286, %v285
        %s288 = sand.u32 %s76, 1
        %s289 = scalar_lea.sflag [#allocation3], %s288
        %s290 = sand.u32 %s76, 1
        %s291 = scalar_lea.vmem [#allocation2], %s290
        // Predicated region
        $region29: #{tpu_custom_call.1} parent=27 // pred_check
          %p292 = pneg %p86
        $region30: #{tpu_custom_call.1} parent=27 // pred_check_branch
          %294 = sbr.rel (%p292) target = $region32
        $region31: #{tpu_custom_call.1} parent=27 // pred_region
          %296 = vsyncadd %s289, 0
          %s297 = scalar_lea.hbm %s2, %s16
          %s299 = sshll.u32 %s291, 4
          %s300 = int_to_ptr.vmem [resolvable:$true] %s299
          %s301 = sshll.u32 %s297, 4
          %s302 = int_to_ptr.hbm [resolvable:$true] %s301
          %304 = dma.vmem_to_hbm [thread:$0]  %s300, 16, %s302, %s289
        $region32: #{tpu_custom_call.1} parent=27 // pred_fallthru
          _
      $region28: #{tpu_custom_call.1} parent=5 // pred_fallthru
        _
      %p305 = scmp.le.s32.totalorder 2, %s11
      // Predicated region
      $region33: #{tpu_custom_call.1} parent=5 // pred_check
        %p306 = pneg %p305
      $region34: #{tpu_custom_call.1} parent=5 // pred_check_branch
        %308 = sbr.rel (%p306) target = $region36
      $region35: #{tpu_custom_call.1} parent=5 // pred_region
        %s309 = ssub.s32 %s11, 2
        // Predicated region
        $region37: #{tpu_custom_call.1} parent=35 // pred_check
          %p310 = pneg %p92
        $region38: #{tpu_custom_call.1} parent=35 // pred_check_branch
          %312 = sbr.rel (%p310) target = $region40
        $region39: #{tpu_custom_call.1} parent=35 // pred_region
          %s313 = sand.u32 %s77, 1
          %s314 = scalar_lea.sflag [#allocation3], %s313
          %s315 = sand.u32 %s77, 1
          %s316 = scalar_lea.vmem [#allocation2], %s315
          %318 = dma.done %s314, 16
        $region40: #{tpu_custom_call.1} parent=35 // pred_fallthru
          _
      $region36: #{tpu_custom_call.1} parent=5 // pred_fallthru
        _
    $region6: #{tpu_custom_call.1} parent=1 // loop_footer
      %s15 = sadd.s32 1, %s11
    $region7: #{tpu_custom_call.1} parent=1 // loop_footer_branch
      %10 = sbr.rel target = $region3
    $region8: #{tpu_custom_call.1} parent=1 // loop_exit
      _
    %319 = vsyncpa [#allocation3], 1
    %s320 = scalar_lea.sflag [#allocation3], 1
    %321 = vsyncpa %s320, 1

</llo_original>
